<compile_context>
chip_gen: v7x
topology: tpu7x:2x2x1
jax: 0.10.0
libtpu: 0.0.40
codegen_flags: <defaults>
</compile_context>

<pallas_src>
from functools import lru_cache, partial

import jax
import jax.numpy as jnp
from jax.experimental import pallas as pl
from jax.experimental.pallas import tpu as pltpu


# --------------------------------------------------------------------------- #
# Kernels
# --------------------------------------------------------------------------- #
def _patch_kernel_lane_dense(x_ref, o_ref, *, b, c, s, t):
    """Lane-dense output path (feedback #1).

    x_ref: (r, Y, Z) = (r, b*s, c*t)  -- one full-(Y, Z) slab of r rows.
    o_ref: (b*c, r, s*t)              -- every patch of that slab with the
                                         (s, t) minor dims collapsed, so stores
                                         and the writeback DMA are lane-dense.
    """
    r = x_ref.shape[0]
    for bi in range(b):                       # static -> fully unrolled
        for ci in range(c):
            patch = x_ref[:, bi * s:(bi + 1) * s, ci * t:(ci + 1) * t]  # (r,s,t)
            # single per-patch (s,t)->(s*t) relayout, then one dense store
            o_ref[bi * c + ci] = patch.reshape(r, s * t)


def _patch_kernel_windowed(x_ref, o_ref, *, b, c, s, t):
    """Known-good fallback: per-patch windowed copy (masked stores of width t).

    x_ref: (r, Y, Z) = (r, b*s, c*t);  o_ref: (b, c, r, s, t)
    """
    # TODO(synk): if bundle dumps show spill ld/st at production size, switch
    # the ci loop to lax.fori_loop(..., unroll=4) keeping bi static (feedback #5).
    for bi in range(b):
        for ci in range(c):
            o_ref[bi, ci] = x_ref[:, bi * s:(bi + 1) * s, ci * t:(ci + 1) * t]


# --------------------------------------------------------------------------- #
# pallas_call construction
# --------------------------------------------------------------------------- #
def _padded_block_bytes(buf_shape, itemsize):
    """Approximate VMEM footprint of one pipeline buffer (last 2 dims tiled)."""
    *lead, sub, lane = buf_shape
    sub_tile = 8 * max(1, 4 // itemsize)      # 8 (f32) / 16 (bf16) / 32 (int8)
    sub_p = -(-sub // sub_tile) * sub_tile
    lane_p = -(-lane // 128) * 128
    n = itemsize * sub_p * lane_p
    for d in lead:
        n *= d
    return n


def _make_patch_call(bc, dtype, img_size, patch_size, lane_dense):
    X, Y, Z = img_size
    r, s, t = patch_size
    a, b, c = X // r, Y // s, Z // t
    itemsize = jnp.dtype(dtype).itemsize

    # One (r, full-Y, full-Z) slab per step: fully contiguous HBM read, last two
    # block dims equal the full array dims (always legal, any dtype packing).
    in_spec = pl.BlockSpec((None, r, Y, Z), lambda n, ai: (n, ai, 0, 0))
    in_bytes = _padded_block_bytes((r, Y, Z), itemsize)
    # TODO(synk): once the lane-dense path is confirmed on all target
    # generations, try pipeline_mode=pl.Buffered(3) on the input spec to deepen
    # prefetch (feedback #8).

    if lane_dense:
        kernel = partial(_patch_kernel_lane_dense, b=b, c=c, s=s, t=t)
        out_shape = jax.ShapeDtypeStruct((bc, a, b * c, r, s * t), dtype)
        out_spec = pl.BlockSpec((None, None, b * c, r, s * t),
                                lambda n, ai: (n, ai, 0, 0, 0))
        out_bytes = _padded_block_bytes((b * c, r, s * t), itemsize)
    else:
        kernel = partial(_patch_kernel_windowed, b=b, c=c, s=s, t=t)
        out_shape = jax.ShapeDtypeStruct((bc, a, b, c, r, s, t), dtype)
        out_spec = pl.BlockSpec((None, None, b, c, r, s, t),
                                lambda n, ai: (n, ai, 0, 0, 0, 0, 0))
        out_bytes = _padded_block_bytes((b * c * r, s, t), itemsize)

    # Double-buffered in+out blocks + 25% slack; floor = default 32 MiB scoped
    # limit, cap 48 MiB so v7x keeps headroom below its 64 MiB physical VMEM
    # (feedback #2).  Never request less than the raw double-buffered need.
    need = 2 * (in_bytes + out_bytes)
    vmem_limit = int(max(min(max(need * 5 // 4, 32 << 20), 48 << 20), need))

    return pl.pallas_call(
        kernel,
        out_shape=out_shape,
        grid=(bc, a),
        in_specs=[in_spec],
        out_specs=out_spec,
        compiler_params=pltpu.CompilerParams(
            # independent blocks per (n, a) -> megacore-shardable on v7x
            dimension_semantics=("parallel", "parallel"),
            vmem_limit_bytes=vmem_limit,
        ),
        cost_estimate=pl.CostEstimate(
            flops=0, transcendentals=0,
            bytes_accessed=2 * bc * X * Y * Z * itemsize),
    )


@lru_cache(maxsize=None)
def _pick_patch_call(bc, dtype_name, img_size, patch_size):
    """Prefer the lane-dense kernel; fall back to the windowed kernel if the
    in-kernel (s,t)->(s*t) relayout does not lower on this Mosaic build."""
    dtype = jnp.dtype(dtype_name)
    x_spec = jax.ShapeDtypeStruct((bc,) + tuple(img_size), dtype)
    dense = jax.jit(_make_patch_call(bc, dtype, img_size, patch_size, True))
    try:
        dense.lower(x_spec).compile()          # surfaces Mosaic lowering errors
        return dense
    except Exception:                          # any lowering failure -> fallback
        return jax.jit(_make_patch_call(bc, dtype, img_size, patch_size, False))


# --------------------------------------------------------------------------- #
# Public forward + reference
# --------------------------------------------------------------------------- #
def patch_forward(x, img_size, patch_size, lane_dense=None):
    """Equivalent of Patch.forward: (B, C, X, Y, Z) -> (B*C, a*b*c, r*s*t).

    lane_dense: True  -> force the lane-dense output kernel,
                False -> force the windowed (known-good) kernel,
                None  -> auto (compile-probe lane-dense, fall back if needed).
    """
    if isinstance(patch_size, int):
        patch_size = (patch_size,) * 3
    B, C, X, Y, Z = x.shape
    assert (X, Y, Z) == tuple(img_size), "input image size mismatch"
    r, s, t = patch_size
    a, b, c = X // r, Y // s, Z // t
    assert a * r == X and b * s == Y and c * t == Z

    x2 = x.reshape(B * C, X, Y, Z)             # contiguous merge: free

    if lane_dense is None:
        call = _pick_patch_call(B * C, jnp.dtype(x.dtype).name,
                                tuple(img_size), tuple(patch_size))
    else:
        call = jax.jit(_make_patch_call(B * C, jnp.dtype(x.dtype),
                                        tuple(img_size), tuple(patch_size),
                                        lane_dense))
    out = call(x2)
    # Both kernel output layouts collapse to the final shape with contiguous
    # (metadata-only) merges: (a, b*c)->(a*b*c) and (r, s*t)->(r*s*t), or the
    # 7-D (a,b,c,r,s,t) equivalent.
    return out.reshape(B * C, a * b * c, r * s * t)


def patch_reference(x, patch_size):
    """Pure-jnp einops-equivalent reference for correctness checking."""
    if isinstance(patch_size, int):
        patch_size = (patch_size,) * 3
    B, C, X, Y, Z = x.shape
    r, s, t = patch_size
    a, b, c = X // r, Y // s, Z // t
    y = x.reshape(B, C, a, r, b, s, c, t)
    y = jnp.transpose(y, (0, 1, 2, 4, 6, 3, 5, 7))      # B C a b c r s t
    return y.reshape(B * C, a * b * c, r * s * t)


# --------------------------------------------------------------------------- #
# Self-test
# --------------------------------------------------------------------------- #
if __name__ == "__main__":
    key = jax.random.PRNGKey(0)

    # Small shapes consistent with the module (scaled down from 150/180/150, 30),
    # including non-power-of-2 patch dims and a bf16 case to exercise packing.
    cases = [
        # (B, C, img_size, patch_size, dtype)
        (2, 3, (8, 16, 16), (4, 8, 8), jnp.float32),   # patch grid (2,2,2)
        (2, 3, (8, 16, 32), (4, 8, 8), jnp.float32),   # patch grid (2,2,4)
        (2, 2, (20, 24, 20), (5, 6, 5), jnp.float32),  # non-pow2, prod-like ratios
        (2, 2, (8, 16, 16), (4, 8, 8), jnp.bfloat16),  # packed-dtype check
    ]

    for B, C, img_size, patch_size, dtype in cases:
        key, sub = jax.random.split(key)
        x = jax.random.normal(sub, (B, C) + img_size, dtype=jnp.float32).astype(dtype)

        ref = patch_reference(x, patch_size)
        a, b, c = (img_size[i] // patch_size[i] for i in range(3))
        r, s, t = patch_size

        # mode False = known-good windowed kernel; mode None = auto (lane-dense
        # if it lowers on this backend, windowed fallback otherwise).
        for mode in (False, None):
            out = jax.block_until_ready(
                patch_forward(x, img_size, patch_size, lane_dense=mode))
            assert out.shape == (B * C, a * b * c, r * s * t), out.shape
            assert out.dtype == x.dtype
            if not jnp.array_equal(out, ref):
                raise AssertionError(
                    f"Pallas Patch kernel mismatch vs reference for "
                    f"{img_size}/{patch_size}/{dtype} (mode={mode})")

    print("KERNEL_OK")
</pallas_src>

<mosaic_0001>
module attributes {stable_mosaic.version = 11 : i64} {
  func.func @_patch_kernel_windowed(%arg0: i32, %arg1: i32, %arg2: memref<1x4x16x16xf32, #tpu.memory_space<vmem>>, %arg3: memref<1x1x2x2x4x8x8xf32, #tpu.memory_space<vmem>>) attributes {dimension_semantics = [#tpu.dimension_semantics<parallel>, #tpu.dimension_semantics<parallel>], iteration_bounds = array<i64: 6, 2>, scalar_prefetch = 0 : i64, scratch_operands = 0 : i64, tpu.core_type = #tpu.core_type<tc>, window_params = [{transform_indices = @transform_0, window_bounds = array<i64: 1, 4, 16, 16>}, {transform_indices = @transform_1, window_bounds = array<i64: 1, 1, 2, 2, 4, 8, 8>}]} {
    %c0 = arith.constant 0 : index
    %c0_0 = arith.constant 0 : index
    %c0_1 = arith.constant 0 : index
    %c0_2 = arith.constant 0 : index
    %0 = vector.load %arg2[%c0, %c0_0, %c0_1, %c0_2] : memref<1x4x16x16xf32, #tpu.memory_space<vmem>>, vector<1x4x8x8xf32>
    %1 = vector.shape_cast %0 : vector<1x4x8x8xf32> to vector<4x8x8xf32>
    %c0_3 = arith.constant 0 : index
    %c0_4 = arith.constant 0 : index
    %c0_5 = arith.constant 0 : index
    %c0_6 = arith.constant 0 : index
    %c0_7 = arith.constant 0 : index
    %c0_8 = arith.constant 0 : index
    %c0_9 = arith.constant 0 : index
    %2 = vector.load %arg3[%c0_3, %c0_4, %c0_5, %c0_6, %c0_7, %c0_8, %c0_9] : memref<1x1x2x2x4x8x8xf32, #tpu.memory_space<vmem>>, vector<1x1x1x1x4x8x8xf32>
    %3 = vector.shape_cast %2 : vector<1x1x1x1x4x8x8xf32> to vector<4x8x8xf32>
    %4 = vector.shape_cast %1 : vector<4x8x8xf32> to vector<1x1x1x1x4x8x8xf32>
    tpu.vector_store %arg3[%c0_3, %c0_4, %c0_5, %c0_6, %c0_7, %c0_8, %c0_9], %4 {strides = array<i32>} : memref<1x1x2x2x4x8x8xf32, #tpu.memory_space<vmem>>, vector<1x1x1x1x4x8x8xf32>,
    %c0_10 = arith.constant 0 : index
    %c0_11 = arith.constant 0 : index
    %c0_12 = arith.constant 0 : index
    %c8 = arith.constant 8 : index
    %5 = vector.load %arg2[%c0_10, %c0_11, %c0_12, %c8] : memref<1x4x16x16xf32, #tpu.memory_space<vmem>>, vector<1x4x8x8xf32>
    %6 = vector.shape_cast %5 : vector<1x4x8x8xf32> to vector<4x8x8xf32>
    %c0_13 = arith.constant 0 : index
    %c0_14 = arith.constant 0 : index
    %c0_15 = arith.constant 0 : index
    %c1 = arith.constant 1 : index
    %c0_16 = arith.constant 0 : index
    %c0_17 = arith.constant 0 : index
    %c0_18 = arith.constant 0 : index
    %7 = vector.load %arg3[%c0_13, %c0_14, %c0_15, %c1, %c0_16, %c0_17, %c0_18] : memref<1x1x2x2x4x8x8xf32, #tpu.memory_space<vmem>>, vector<1x1x1x1x4x8x8xf32>
    %8 = vector.shape_cast %7 : vector<1x1x1x1x4x8x8xf32> to vector<4x8x8xf32>
    %9 = vector.shape_cast %6 : vector<4x8x8xf32> to vector<1x1x1x1x4x8x8xf32>
    tpu.vector_store %arg3[%c0_13, %c0_14, %c0_15, %c1, %c0_16, %c0_17, %c0_18], %9 {strides = array<i32>} : memref<1x1x2x2x4x8x8xf32, #tpu.memory_space<vmem>>, vector<1x1x1x1x4x8x8xf32>,
    %c0_19 = arith.constant 0 : index
    %c0_20 = arith.constant 0 : index
    %c8_21 = arith.constant 8 : index
    %c0_22 = arith.constant 0 : index
    %10 = vector.load %arg2[%c0_19, %c0_20, %c8_21, %c0_22] : memref<1x4x16x16xf32, #tpu.memory_space<vmem>>, vector<1x4x8x8xf32>
    %11 = vector.shape_cast %10 : vector<1x4x8x8xf32> to vector<4x8x8xf32>
    %c0_23 = arith.constant 0 : index
    %c0_24 = arith.constant 0 : index
    %c1_25 = arith.constant 1 : index
    %c0_26 = arith.constant 0 : index
    %c0_27 = arith.constant 0 : index
    %c0_28 = arith.constant 0 : index
    %c0_29 = arith.constant 0 : index
    %12 = vector.load %arg3[%c0_23, %c0_24, %c1_25, %c0_26, %c0_27, %c0_28, %c0_29] : memref<1x1x2x2x4x8x8xf32, #tpu.memory_space<vmem>>, vector<1x1x1x1x4x8x8xf32>
    %13 = vector.shape_cast %12 : vector<1x1x1x1x4x8x8xf32> to vector<4x8x8xf32>
    %14 = vector.shape_cast %11 : vector<4x8x8xf32> to vector<1x1x1x1x4x8x8xf32>
    tpu.vector_store %arg3[%c0_23, %c0_24, %c1_25, %c0_26, %c0_27, %c0_28, %c0_29], %14 {strides = array<i32>} : memref<1x1x2x2x4x8x8xf32, #tpu.memory_space<vmem>>, vector<1x1x1x1x4x8x8xf32>,
    %c0_30 = arith.constant 0 : index
    %c0_31 = arith.constant 0 : index
    %c8_32 = arith.constant 8 : index
    %c8_33 = arith.constant 8 : index
    %15 = vector.load %arg2[%c0_30, %c0_31, %c8_32, %c8_33] : memref<1x4x16x16xf32, #tpu.memory_space<vmem>>, vector<1x4x8x8xf32>
    %16 = vector.shape_cast %15 : vector<1x4x8x8xf32> to vector<4x8x8xf32>
    %c0_34 = arith.constant 0 : index
    %c0_35 = arith.constant 0 : index
    %c1_36 = arith.constant 1 : index
    %c1_37 = arith.constant 1 : index
    %c0_38 = arith.constant 0 : index
    %c0_39 = arith.constant 0 : index
    %c0_40 = arith.constant 0 : index
    %17 = vector.load %arg3[%c0_34, %c0_35, %c1_36, %c1_37, %c0_38, %c0_39, %c0_40] : memref<1x1x2x2x4x8x8xf32, #tpu.memory_space<vmem>>, vector<1x1x1x1x4x8x8xf32>
    %18 = vector.shape_cast %17 : vector<1x1x1x1x4x8x8xf32> to vector<4x8x8xf32>
    %19 = vector.shape_cast %16 : vector<4x8x8xf32> to vector<1x1x1x1x4x8x8xf32>
    tpu.vector_store %arg3[%c0_34, %c0_35, %c1_36, %c1_37, %c0_38, %c0_39, %c0_40], %19 {strides = array<i32>} : memref<1x1x2x2x4x8x8xf32, #tpu.memory_space<vmem>>, vector<1x1x1x1x4x8x8xf32>,
    return
  }
  func.func @transform_0(%arg0: i32, %arg1: i32) -> (i32, i32, i32, i32) {
    %c0_i32 = arith.constant 0 : i32
    %c0_i32_0 = arith.constant 0 : i32
    %c0_i32_1 = arith.constant 0 : i32
    return %arg0, %arg1, %c0_i32, %c0_i32_0 : i32, i32, i32, i32
  }
  func.func @transform_1(%arg0: i32, %arg1: i32) -> (i32, i32, i32, i32, i32, i32, i32) {
    %c0_i32 = arith.constant 0 : i32
    %c0_i32_0 = arith.constant 0 : i32
    %c0_i32_1 = arith.constant 0 : i32
    %c0_i32_2 = arith.constant 0 : i32
    %c0_i32_3 = arith.constant 0 : i32
    %c0_i32_4 = arith.constant 0 : i32
    return %arg0, %arg1, %c0_i32, %c0_i32_0, %c0_i32_1, %c0_i32_2, %c0_i32_3 : i32, i32, i32, i32, i32, i32, i32
  }
}

</mosaic_0001>

<llo_original>
// kernel: tpu_custom_call.1
$region0: #{tpu_custom_call.1}
  #allocation0 [shape = 'u32[]', space=smem, size = 0x4, offset = 0x4, fixed_abs, tag = 'smem constant byte address 0x4 - core index']
  #allocation1 [shape = 'u32[144,128]{1,0:T(1,128)}', space=vmem, size = 0x12000, scoped, tag = 'internal scratch']
  %s0 = inlined_call_operand.hbm [shape: f32[6,8,16,16], index: 0, kind: input, shape index: {}]
  %s1 = inlined_call_operand.hbm [shape: f32[6,2,2,2,4,8,8], index: 1, kind: output, shape index: {}]
  %s2 = sld [smem:[#allocation0]]
  $region41: #{tpu_custom_call.1} parent=0
    _
  %s4 = ssub.s32 1, %s2
  %s5 = scalar_select 0, %s4, %s2
  $region1: #{tpu_custom_call.1} parent=0
    #allocation2 [shape = 'u8[65536]{0}', space=vmem, size = 0x10000, scoped, tag = 'input window, operand 0']
    #allocation3 [shape = 's32[2]{0}', space=sflag, size = 0x8, scoped, tag = 'scoped memory for tpu_custom_call.1']
    #allocation4 [shape = 's32[2]{0}', space=sflag, size = 0x8, scoped, tag = 'scoped memory for tpu_custom_call.1']
    #allocation5 [shape = 'u8[131072]{0}', space=vmem, size = 0x20000, scoped, tag = 'output window, operand 0']
    %6 = vsyncpa [#allocation3], 0
    %s7 = scalar_lea.sflag [#allocation3], 1
    %8 = vsyncpa %s7, 0
    %9 = vsyncpa [#allocation4], 0
    %s10 = scalar_lea.sflag [#allocation4], 1
    %11 = vsyncpa %s10, 0
    loop: start=0, step=1, limit=14
    $region2: #{tpu_custom_call.1} parent=1 // loop_pre_header
      _
    $region3: #{tpu_custom_call.1} parent=1 // loop_header
      %s13 = sphi 0, %s17
      %p14 = scmp.ge.s32.totalorder %s13, 14
      %s20 = sphi 0, %s32
      %s21 = sphi 0, %s28
      %s22 = sphi 0, %s20
      %s23 = sphi 0, %s21
      %s24 = sphi 0, %s22
      %s25 = sphi 0, %s23
      %s37 = sphi 0, %s39
      %s40 = sphi 0, %s37
      %s41 = sphi 0, %s40
      %s57 = sphi 0, %s41
      %s65 = sphi 0, %s67
      %s68 = sphi 0, %s65
      %s69 = sphi 0, %s68
      %s85 = sphi 0, %s69
    $region4: #{tpu_custom_call.1} parent=1 // loop_header_branch
      %16 = sbr.rel (%p14) target = $region8
    $region5: #{tpu_custom_call.1} parent=1 // loop_body
      %s18 = ssub.s32 %s13, 1
      %s19 = ssub.s32 %s13, 2
      %s26 = sadd.s32 1, %s21
      %p27 = scmp.ge.s32.totalorder %s26, 2
      %s28 = scalar_select %p27, 0, %s26
      %s29 = sadd.s32 1, %s20
      %s30 = scalar_select %p27, %s29, %s20
      %p31 = scmp.ge.s32.totalorder %s30, 6
      %s32 = scalar_select %p31, 0, %s30
      %s33 = ssub.s32 %s20, %s32
      %s34 = ssub.s32 %s21, %s28
      %s35 = sor.u32 %s33, %s34
      %p36 = scmp.eq.s32.totalorder %s35, 0
      %s38 = sadd.s32 %s37, 1
      %s39 = scalar_select %p36, %s37, %s38
      %p42 = pneg %p36
      %p43 = scmp.eq.s32.totalorder %s13, 11
      %p44 = por %p42, %p43
      %p45 = scmp.ne.s32.totalorder %s37, %s40
      %p46 = scmp.eq.s32.totalorder %s13, 0
      %p47 = por %p45, %p46
      %p48 = scmp.ne.s32.totalorder %s37, %s40
      %p49 = scmp.eq.s32.totalorder %s18, 11
      %p50 = por %p48, %p49
      %p51 = scmp.ne.s32.totalorder %s40, %s41
      %p52 = scmp.eq.s32.totalorder %s18, 0
      %p53 = por %p51, %p52
      %p54 = scmp.ne.s32.totalorder %s40, %s41
      %p55 = scmp.eq.s32.totalorder %s19, 11
      %p56 = por %p54, %p55
      %p58 = scmp.ne.s32.totalorder %s41, %s57
      %p59 = scmp.eq.s32.totalorder %s19, 0
      %p60 = por %p58, %p59
      %s61 = ssub.s32 %s20, %s32
      %s62 = ssub.s32 %s21, %s28
      %s63 = sor.u32 %s61, %s62
      %p64 = scmp.eq.s32.totalorder %s63, 0
      %s66 = sadd.s32 %s65, 1
      %s67 = scalar_select %p64, %s65, %s66
      %p70 = pneg %p64
      %p71 = scmp.eq.s32.totalorder %s13, 11
      %p72 = por %p70, %p71
      %p73 = scmp.ne.s32.totalorder %s65, %s68
      %p74 = scmp.eq.s32.totalorder %s13, 0
      %p75 = por %p73, %p74
      %p76 = scmp.ne.s32.totalorder %s65, %s68
      %p77 = scmp.eq.s32.totalorder %s18, 11
      %p78 = por %p76, %p77
      %p79 = scmp.ne.s32.totalorder %s68, %s69
      %p80 = scmp.eq.s32.totalorder %s18, 0
      %p81 = por %p79, %p80
      %p82 = scmp.ne.s32.totalorder %s68, %s69
      %p83 = scmp.eq.s32.totalorder %s19, 11
      %p84 = por %p82, %p83
      %p86 = scmp.ne.s32.totalorder %s69, %s85
      %p87 = scmp.eq.s32.totalorder %s19, 0
      %p88 = por %p86, %p87
      %p89 = scmp.le.s32.totalorder 1, %s13
      %p90 = scmp.lt.s32.totalorder %s13, 13
      %p91 = pnand %p89, %p90
      %p92 = pneg %p91
      // Predicated region
      $region9: #{tpu_custom_call.1} parent=5 // pred_check
        _
      $region10: #{tpu_custom_call.1} parent=5 // pred_check_branch
        %94 = sbr.rel (%p91) target = $region12
      $region11: #{tpu_custom_call.1} parent=5 // pred_region
        %s95 = ssub.s32 %s13, 1
      $region12: #{tpu_custom_call.1} parent=5 // pred_fallthru
        _
      %p96 = scmp.lt.s32.totalorder %s13, 12
      // Predicated region
      $region13: #{tpu_custom_call.1} parent=5 // pred_check
        %p97 = pneg %p96
      $region14: #{tpu_custom_call.1} parent=5 // pred_check_branch
        %99 = sbr.rel (%p97) target = $region16
      $region15: #{tpu_custom_call.1} parent=5 // pred_region
        // Predicated region
        $region17: #{tpu_custom_call.1} parent=15 // pred_check
          %p100 = pneg %p47
        $region18: #{tpu_custom_call.1} parent=15 // pred_check_branch
          %102 = sbr.rel (%p100) target = $region20
        $region19: #{tpu_custom_call.1} parent=15 // pred_region
          %s103 = sand.u32 %s37, 1
          %s104 = scalar_lea.sflag [#allocation3], %s103
          %s105 = sand.u32 %s37, 1
          %s106 = smul.addr %s105, 64
          %s107 = scalar_lea.vmem [#allocation2], %s106
          %s108 = smul.u32 4, %s21
          %s110 = ssub.s32 1024, 1024
          %111 = vsyncadd %s104, %s110
          %s112 = smul.addr %s108, 2
          %s113 = smul.addr %s20, 16
          %s114 = sadd.s32 %s112, %s113
          %s115 = smul.addr %s114, 128
          %s116 = scalar_lea.hbm %s0, %s115
          %s117 = sshll.u32 %s107, 4
          %s118 = int_to_ptr.vmem [resolvable:$true] %s117
          %123 = dma.hbm_to_vmem [thread:$0]  %s116, 1024, %s118, %s104, 128, 128, 8
        $region20: #{tpu_custom_call.1} parent=15 // pred_fallthru
          _
      $region16: #{tpu_custom_call.1} parent=5 // pred_fallthru
        _
      %p124 = scmp.le.s32.totalorder 1, %s13
      %p125 = scmp.lt.s32.totalorder %s13, 13
      %p126 = pnand %p124, %p125
      %p127 = pneg %p126
      // Predicated region
      $region21: #{tpu_custom_call.1} parent=5 // pred_check
        _
      $region22: #{tpu_custom_call.1} parent=5 // pred_check_branch
        %129 = sbr.rel (%p126) target = $region24
      $region23: #{tpu_custom_call.1} parent=5 // pred_region
        %s130 = ssub.s32 %s13, 1
        %s131 = sand.u32 %s40, 1
        %s132 = scalar_lea.sflag [#allocation3], %s131
        %s133 = sand.u32 %s40, 1
        %s134 = smul.addr %s133, 64
        %s135 = scalar_lea.vmem [#allocation2], %s134
        // Predicated region
        $region25: #{tpu_custom_call.1} parent=23 // pred_check
          %p136 = pneg %p53
        $region26: #{tpu_custom_call.1} parent=23 // pred_check_branch
          %138 = sbr.rel (%p136) target = $region28
        $region27: #{tpu_custom_call.1} parent=23 // pred_region
          %139 = dma.done %s132, 1024
        $region28: #{tpu_custom_call.1} parent=23 // pred_fallthru
          _
        %s140 = sand.u32 %s40, 1
        %s141 = scalar_lea.sflag [#allocation3], %s140
        %s142 = sand.u32 %s40, 1
        %s143 = smul.addr %s142, 64
        %s144 = scalar_lea.vmem [#allocation2], %s143
        %p145 = pneg %p53
        %p146 = pneg %p50
        %p147 = pneg %p81
        %p148 = pneg %p78
        %s149 = sand.u32 %s68, 1
        %s150 = scalar_lea.sflag [#allocation4], %s149
        %s151 = sand.u32 %s68, 1
        %s152 = smul.addr %s151, 128
        %s153 = scalar_lea.vmem [#allocation5], %s152
        %s154 = smul.u32 4, %s23
        %v155 = vld [vmem:[%s135] sm:$0xff]
        %v156 = vld [vmem:[%s135 + $0x10] sm:$0xff]
        %v157 = vld [vmem:[%s135 + $0x20] sm:$0xff]
        %v158 = vld [vmem:[%s135 + $0x30] sm:$0xff]
        %vm159 = vcmask 64512
        %160 = vst.msk [vmem:[%s153] sm:$0xff] %vm159, %v155
        %161 = vst.msk [vmem:[%s153 + $0x8] sm:$0xff] %vm159, %v156
        %162 = vst.msk [vmem:[%s153 + $0x10] sm:$0xff] %vm159, %v157
        %163 = vst.msk [vmem:[%s153 + $0x18] sm:$0xff] %vm159, %v158
        %v164 = vld [vmem:[%s135] sm:$0xff]
        %v165 = vld [vmem:[%s135 + $0x10] sm:$0xff]
        %v166 = vld [vmem:[%s135 + $0x20] sm:$0xff]
        %v167 = vld [vmem:[%s135 + $0x30] sm:$0xff]
        %172 = vrot.lane.b32.xlu0 %v164, 120
        %v173 = vpop.permute.xlu0 %172
        %174 = vrot.lane.b32.xlu0 %v165, 120
        %v175 = vpop.permute.xlu0 %174
        %176 = vrot.lane.b32.xlu0 %v166, 120
        %v177 = vpop.permute.xlu0 %176
        %178 = vrot.lane.b32.xlu0 %v167, 120
        %v179 = vpop.permute.xlu0 %178
        %s184 = scalar_lea.vmem %s153, 32 [#allocation5]
        %185 = vst.msk [vmem:[%s184] sm:$0xff] %vm159, %v173
        %186 = vst.msk [vmem:[%s184 + $0x8] sm:$0xff] %vm159, %v175
        %187 = vst.msk [vmem:[%s184 + $0x10] sm:$0xff] %vm159, %v177
        %188 = vst.msk [vmem:[%s184 + $0x18] sm:$0xff] %vm159, %v179
        %v189 = vld [vmem:[%s135 + $0x8] sm:$0xff]
        %v190 = vld [vmem:[%s135 + $0x18] sm:$0xff]
        %v191 = vld [vmem:[%s135 + $0x28] sm:$0xff]
        %v192 = vld [vmem:[%s135 + $0x38] sm:$0xff]
        %s193 = scalar_lea.vmem %s153, 64 [#allocation5]
        %194 = vst.msk [vmem:[%s193] sm:$0xff] %vm159, %v189
        %195 = vst.msk [vmem:[%s193 + $0x8] sm:$0xff] %vm159, %v190
        %196 = vst.msk [vmem:[%s193 + $0x10] sm:$0xff] %vm159, %v191
        %197 = vst.msk [vmem:[%s193 + $0x18] sm:$0xff] %vm159, %v192
        %v198 = vld [vmem:[%s135 + $0x8] sm:$0xff]
        %v199 = vld [vmem:[%s135 + $0x18] sm:$0xff]
        %v200 = vld [vmem:[%s135 + $0x28] sm:$0xff]
        %v201 = vld [vmem:[%s135 + $0x38] sm:$0xff]
        %206 = vrot.lane.b32.xlu0 %v198, 120
        %v207 = vpop.permute.xlu0 %206
        %208 = vrot.lane.b32.xlu0 %v199, 120
        %v209 = vpop.permute.xlu0 %208
        %210 = vrot.lane.b32.xlu0 %v200, 120
        %v211 = vpop.permute.xlu0 %210
        %212 = vrot.lane.b32.xlu0 %v201, 120
        %v213 = vpop.permute.xlu0 %212
        %s218 = scalar_lea.vmem %s153, 96 [#allocation5]
        %219 = vst.msk [vmem:[%s218] sm:$0xff] %vm159, %v207
        %220 = vst.msk [vmem:[%s218 + $0x8] sm:$0xff] %vm159, %v209
        %221 = vst.msk [vmem:[%s218 + $0x10] sm:$0xff] %vm159, %v211
        %222 = vst.msk [vmem:[%s218 + $0x18] sm:$0xff] %vm159, %v213
        %s223 = sand.u32 %s68, 1
        %s224 = scalar_lea.sflag [#allocation4], %s223
        %s225 = sand.u32 %s68, 1
        %s226 = smul.addr %s225, 128
        %s227 = scalar_lea.vmem [#allocation5], %s226
        // Predicated region
        $region29: #{tpu_custom_call.1} parent=23 // pred_check
          %p228 = pneg %p78
        $region30: #{tpu_custom_call.1} parent=23 // pred_check_branch
          %230 = sbr.rel (%p228) target = $region32
        $region31: #{tpu_custom_call.1} parent=23 // pred_region
          %s232 = ssub.s32 2048, 2048
          %233 = vsyncadd %s224, %s232
          %s234 = smul.addr %s23, 16
          %s235 = smul.addr %s22, 32
          %s236 = sadd.s32 %s234, %s235
          %s237 = smul.addr %s236, 128
          %s238 = scalar_lea.hbm %s1, %s237
          %s239 = sshll.u32 %s227, 4
          %s240 = int_to_ptr.vmem [resolvable:$true] %s239
          %245 = dma.vmem_to_hbm [thread:$0]  %s240, 2048, %s238, %s224, 128, 128, 8
        $region32: #{tpu_custom_call.1} parent=23 // pred_fallthru
          _
      $region24: #{tpu_custom_call.1} parent=5 // pred_fallthru
        _
      %p246 = scmp.le.s32.totalorder 2, %s13
      // Predicated region
      $region33: #{tpu_custom_call.1} parent=5 // pred_check
        %p247 = pneg %p246
      $region34: #{tpu_custom_call.1} parent=5 // pred_check_branch
        %249 = sbr.rel (%p247) target = $region36
      $region35: #{tpu_custom_call.1} parent=5 // pred_region
        %s250 = ssub.s32 %s13, 2
        // Predicated region
        $region37: #{tpu_custom_call.1} parent=35 // pred_check
          %p251 = pneg %p84
        $region38: #{tpu_custom_call.1} parent=35 // pred_check_branch
          %253 = sbr.rel (%p251) target = $region40
        $region39: #{tpu_custom_call.1} parent=35 // pred_region
          %s254 = sand.u32 %s69, 1
          %s255 = scalar_lea.sflag [#allocation4], %s254
          %s256 = sand.u32 %s69, 1
          %s257 = smul.addr %s256, 128
          %s258 = scalar_lea.vmem [#allocation5], %s257
          %259 = dma.done %s255, 2048
        $region40: #{tpu_custom_call.1} parent=35 // pred_fallthru
          _
      $region36: #{tpu_custom_call.1} parent=5 // pred_fallthru
        _
    $region6: #{tpu_custom_call.1} parent=1 // loop_footer
      %s17 = sadd.s32 1, %s13
    $region7: #{tpu_custom_call.1} parent=1 // loop_footer_branch
      %12 = sbr.rel target = $region3
    $region8: #{tpu_custom_call.1} parent=1 // loop_exit
      _
    %260 = vsyncpa [#allocation3], 1
    %s261 = scalar_lea.sflag [#allocation3], 1
    %262 = vsyncpa %s261, 1
    %263 = vsyncpa [#allocation4], 1
    %s264 = scalar_lea.sflag [#allocation4], 1
    %265 = vsyncpa %s264, 1

</llo_original>
